<compile_context>
chip_gen: v6e
topology: v6e:2x2x1
jax: 0.10.0
libtpu: 0.0.40
codegen_flags: <defaults>
</compile_context>

<pallas_src>
import functools

import jax
import jax.numpy as jnp
from jax import lax
from jax.experimental import pallas as pl
from jax.experimental.pallas import tpu as pltpu

_LANE = 128
_SUBLANE = 8


def _round_up(x, m):
    return ((x + m - 1) // m) * m


# ---------------------------------------------------------------------------
# Kernels
# ---------------------------------------------------------------------------

def _rmse_sum_kernel(a_ref, b_ref, o_ref, acc_ref, *,
                     tile_f, cols, tpc, num_tiles, ragged, has_phantom):
    c = pl.program_id(0)            # "parallel" (core) axis
    j = pl.program_id(1)            # "arbitrary" (reduction) axis
    t = c * tpc + j                 # global tile index
    last_real = num_tiles - 1

    @pl.when(j == 0)
    def _():
        acc_ref[...] = jnp.zeros_like(acc_ref)

    def accumulate(apply_colmask):
        a = a_ref[...].astype(jnp.float32)
        b = b_ref[...].astype(jnp.float32)
        d = a - b
        contrib = d * d
        if apply_colmask:
            # Only the globally-last tile is ragged -> static column base.
            base = last_real * tile_f
            col = base + lax.broadcasted_iota(jnp.int32, contrib.shape, 1)
            contrib = jnp.where(col < cols, contrib, 0.0)
        acc_ref[...] += contrib     # pure VPU work in the steady state

    if ragged:
        @pl.when(t < last_real)
        def _():
            accumulate(False)

        @pl.when(t == last_real)
        def _():
            accumulate(True)
        # t > last_real (phantom step of the 2-core split): skip entirely.
    elif has_phantom:
        @pl.when(t <= last_real)
        def _():
            accumulate(False)
    else:
        accumulate(False)

    @pl.when(j == pl.num_programs(1) - 1)
    def _():
        # Single cross-lane/sublane reduce, once per core, in the epilogue.
        o_ref[...] = jnp.sum(acc_ref[...])[None, None, None]


def _rmse_masked_sum_kernel(a_ref, b_ref, m_ref, num_ref, den_ref,
                            acc_num, acc_den, *,
                            tile_f, cols, tpc, num_tiles, ragged, has_phantom):
    c = pl.program_id(0)
    j = pl.program_id(1)
    t = c * tpc + j
    last_real = num_tiles - 1

    @pl.when(j == 0)
    def _():
        acc_num[...] = jnp.zeros_like(acc_num)
        acc_den[...] = jnp.zeros_like(acc_den)

    def accumulate(apply_colmask):
        a = a_ref[...].astype(jnp.float32)
        b = b_ref[...].astype(jnp.float32)
        m = m_ref[...].astype(jnp.float32)
        d = a - b
        sq = d * d * m
        if apply_colmask:
            base = last_real * tile_f
            col = base + lax.broadcasted_iota(jnp.int32, sq.shape, 1)
            keep = col < cols
            # select (not multiply) so edge-block garbage never leaks in.
            sq = jnp.where(keep, sq, 0.0)
            m = jnp.where(keep, m, 0.0)
        acc_num[...] += sq
        acc_den[...] += m

    if ragged:
        @pl.when(t < last_real)
        def _():
            accumulate(False)

        @pl.when(t == last_real)
        def _():
            accumulate(True)
    elif has_phantom:
        @pl.when(t <= last_real)
        def _():
            accumulate(False)
    else:
        accumulate(False)

    @pl.when(j == pl.num_programs(1) - 1)
    def _():
        # Per-row partial numerator / denominator; the divide happens only
        # after all tiles / both cores are combined in the wrapper.
        num_ref[...] = jnp.sum(acc_num[...], axis=1, keepdims=True)[None, :, :]
        den_ref[...] = jnp.sum(acc_den[...], axis=1, keepdims=True)[None, :, :]


# ---------------------------------------------------------------------------
# Planning helpers
# ---------------------------------------------------------------------------

def _fold_factor(n, feat, max_rows=512, min_cols=1024):
    """Fold part of the feature axis into rows (a free reshape of contiguous
    NCHW data) so small batches fill all 8 sublanes of each VMEM tile."""
    if feat < 2 * min_cols or n % _SUBLANE == 0:
        return 1
    best_occ = n / _round_up(n, _SUBLANE)
    best_r = 1
    for r in range(2, 65):
        if feat % r:
            continue
        rows, cols = n * r, feat // r
        if rows > max_rows or cols < min_cols:
            continue
        occ = rows / _round_up(rows, _SUBLANE)
        if occ > best_occ + 1e-9:
            best_occ, best_r = occ, r
            if occ >= 0.999:
                break
    return best_r


def _vmem_info():
    try:
        info = pltpu.get_tpu_info()
        phys = int(getattr(info, "vmem_capacity_bytes", 64 * 2**20))
    except Exception:
        phys = 64 * 2**20          # v7x per-TC physical VMEM (smallest case)
    return max(phys, 32 * 2**20)


def _plan(rows, cols, per_col_bytes, tile_f):
    """Pick the reduction tile width + grid split and the VMEM limit."""
    padded_rows = _round_up(rows, _SUBLANE)
    phys = _vmem_info()
    # Budget for double-buffered blocks + accumulators (headroom for Mosaic
    # internal scratch / outputs is added to vmem_limit below).
    budget = max(4 * 2**20, min(24 * 2**20, phys // 2 - 8 * 2**20))

    if tile_f is None:
        per_col = padded_rows * per_col_bytes
        tile_f = (budget // per_col) // _LANE * _LANE
        cap = _LANE if cols < _LANE else (cols // _LANE) * _LANE
        tile_f = max(_LANE, min(tile_f, cap))
        # If the whole (folded) row fits in one tile, split it in two so both
        # TensorCores get work on v7x (harmless 2-step serial loop elsewhere).
        if pl.cdiv(cols, tile_f) == 1 and cols >= 8 * _LANE:
            tile_f = _round_up(pl.cdiv(cols, 2), _LANE)
    assert tile_f % _LANE == 0

    num_tiles = pl.cdiv(cols, tile_f)
    if num_tiles >= 2:
        ncores, tpc = 2, pl.cdiv(num_tiles, 2)
    else:
        ncores, tpc = 1, 1
    ragged = (cols % tile_f) != 0
    has_phantom = (ncores * tpc) != num_tiles

    blocks = padded_rows * tile_f * per_col_bytes
    vmem_limit = int(min(phys - 4 * 2**20, max(32 * 2**20, blocks + 16 * 2**20)))
    return tile_f, num_tiles, ncores, tpc, ragged, has_phantom, vmem_limit


def _index_map(tpc, num_tiles, clamp):
    if clamp:
        last = num_tiles - 1
        return lambda c, j: (0, jnp.minimum(c * tpc + j, last))
    return lambda c, j: (0, c * tpc + j)


# ---------------------------------------------------------------------------
# Public wrapper
# ---------------------------------------------------------------------------

def rmse(im1, im2, mask=None, *, tile_f=None):
    assert im1.shape == im2.shape, "input shape mismatch"
    n = im1.shape[0]
    feat = 1
    for s in im1.shape[1:]:
        feat *= s
    isz = im1.dtype.itemsize

    # Free reshape (contiguous row-major): fold feature into rows for sublane
    # occupancy, then tile the (folded) feature axis.
    r = _fold_factor(n, feat)
    rows, cols = n * r, feat // r
    a = im1.reshape(rows, cols)          # native dtype; cast happens in-kernel
    b = im2.reshape(rows, cols)

    sem = ("parallel", "arbitrary")
    # TODO(synk): huge batches (rows >> 1024) would additionally want row
    # tiling; not needed for image-metric batch sizes.

    if mask is None:
        per_col = 2 * 2 * isz + 4        # 2 streams x 2 buffers + f32 acc
        tf, num_tiles, ncores, tpc, ragged, phantom, vmem_limit = _plan(
            rows, cols, per_col, tile_f)
        in_spec = pl.BlockSpec((rows, tf), _index_map(tpc, num_tiles, phantom))
        kern = functools.partial(
            _rmse_sum_kernel, tile_f=tf, cols=cols, tpc=tpc,
            num_tiles=num_tiles, ragged=ragged, has_phantom=phantom)
        partials = pl.pallas_call(
            kern,
            grid_spec=pltpu.PrefetchScalarGridSpec(
                num_scalar_prefetch=0,
                grid=(ncores, tpc),
                in_specs=[in_spec, in_spec],
                out_specs=pl.BlockSpec((1, 1, 1), lambda c, j: (c, 0, 0)),
                scratch_shapes=[pltpu.VMEM((rows, tf), jnp.float32)]),
            out_shape=jax.ShapeDtypeStruct((ncores, 1, 1), jnp.float32),
            compiler_params=pltpu.CompilerParams(
                dimension_semantics=sem, vmem_limit_bytes=vmem_limit),
        )(a, b)
        total = jnp.sum(partials)        # tiny cross-core combine
        return jnp.sqrt(total / jnp.float32(n * feat))

    assert mask.shape == im1.shape, "mask shape mismatch"
    m = mask
    if m.dtype == jnp.bool_:
        m = m.astype(jnp.int8)           # 1 B/elem on the wire; f32 cast in-kernel
    m = m.reshape(rows, cols)
    msz = m.dtype.itemsize

    per_col = 2 * 2 * isz + 2 * msz + 2 * 4   # 2 img + mask streams + 2 f32 accs
    tf, num_tiles, ncores, tpc, ragged, phantom, vmem_limit = _plan(
        rows, cols, per_col, tile_f)
    in_spec = pl.BlockSpec((rows, tf), _index_map(tpc, num_tiles, phantom))
    kern = functools.partial(
        _rmse_masked_sum_kernel, tile_f=tf, cols=cols, tpc=tpc,
        num_tiles=num_tiles, ragged=ragged, has_phantom=phantom)
    num_p, den_p = pl.pallas_call(
        kern,
        grid_spec=pltpu.PrefetchScalarGridSpec(
            num_scalar_prefetch=0,
            grid=(ncores, tpc),
            in_specs=[in_spec, in_spec, in_spec],
            out_specs=(pl.BlockSpec((1, rows, 1), lambda c, j: (c, 0, 0)),
                       pl.BlockSpec((1, rows, 1), lambda c, j: (c, 0, 0))),
            scratch_shapes=[pltpu.VMEM((rows, tf), jnp.float32),
                            pltpu.VMEM((rows, tf), jnp.float32)]),
        out_shape=(jax.ShapeDtypeStruct((ncores, rows, 1), jnp.float32),
                   jax.ShapeDtypeStruct((ncores, rows, 1), jnp.float32)),
        compiler_params=pltpu.CompilerParams(
            dimension_semantics=sem, vmem_limit_bytes=vmem_limit),
    )(a, b, m)
    num = jnp.sum(num_p, axis=(0, 2))    # (rows,)
    den = jnp.sum(den_p, axis=(0, 2))
    if r > 1:                            # regroup folded rows back to samples
        num = num.reshape(n, r).sum(-1)
        den = den.reshape(n, r).sum(-1)
    per_sample = num / den               # NaN for all-zero mask rows (== torch)
    return jnp.sqrt(jnp.mean(per_sample))


# ---------------------------------------------------------------------------
# Reference + driver
# ---------------------------------------------------------------------------

def _rmse_ref(im1, im2, mask=None):
    sq = (im1.astype(jnp.float32) - im2.astype(jnp.float32)) ** 2
    if mask is not None:
        n = im1.shape[0]
        mf = mask.astype(jnp.float32)
        num = (sq * mf).reshape(n, -1).sum(-1)
        den = mf.reshape(n, -1).sum(-1)
        sq = num / den
    return jnp.sqrt(sq.mean())


if __name__ == "__main__":
    ks = jax.random.split(jax.random.PRNGKey(0), 8)

    shape = (2, 4, 16, 16)               # NCHW, F = 1024
    im1 = jax.random.normal(ks[0], shape, dtype=jnp.float32)
    im2 = jax.random.normal(ks[1], shape, dtype=jnp.float32)
    maskf = (jax.random.uniform(ks[2], shape) > 0.5).astype(jnp.float32)
    maskb = jax.random.uniform(ks[2], shape) > 0.5   # bool -> int8 wire format

    out = jax.block_until_ready(rmse(im1, im2))
    assert jnp.allclose(out, _rmse_ref(im1, im2), rtol=1e-5, atol=1e-5)

    out_m = jax.block_until_ready(rmse(im1, im2, maskf))
    assert jnp.allclose(out_m, _rmse_ref(im1, im2, maskf), rtol=1e-5, atol=1e-5)

    out_b = jax.block_until_ready(rmse(im1, im2, maskb))
    assert jnp.allclose(out_b, _rmse_ref(im1, im2, maskf), rtol=1e-5, atol=1e-5)

    # Multi-step reduction (8 tiles split over the 2-core axis).
    out_small = jax.block_until_ready(rmse(im1, im2, maskf, tile_f=128))
    assert jnp.allclose(out_small, _rmse_ref(im1, im2, maskf), rtol=1e-5, atol=1e-5)

    # Odd tile count (3 tiles over 2 cores -> clamped phantom step) + ragged
    # last tile: exercises the fixed 2-TensorCore split.
    out_odd = jax.block_until_ready(rmse(im1, im2, tile_f=384))
    assert jnp.allclose(out_odd, _rmse_ref(im1, im2), rtol=1e-5, atol=1e-5)
    out_odd_m = jax.block_until_ready(rmse(im1, im2, maskf, tile_f=384))
    assert jnp.allclose(out_odd_m, _rmse_ref(im1, im2, maskf), rtol=1e-5, atol=1e-5)

    # Native bf16 inputs (no wrapper upcast; cast happens in-kernel).
    out_bf = jax.block_until_ready(
        rmse(im1.astype(jnp.bfloat16), im2.astype(jnp.bfloat16)))
    ref_bf = _rmse_ref(im1.astype(jnp.bfloat16), im2.astype(jnp.bfloat16))
    assert jnp.allclose(out_bf, ref_bf, rtol=1e-3, atol=1e-3)

    # Ragged feature count (F = 297): in-kernel tail masking on the edge tile.
    rshape = (2, 3, 9, 11)
    r1 = jax.random.normal(ks[3], rshape, dtype=jnp.float32)
    r2 = jax.random.normal(ks[4], rshape, dtype=jnp.float32)
    rmask = (jax.random.uniform(ks[5], rshape) > 0.5).astype(jnp.float32)
    assert jnp.allclose(rmse(r1, r2), _rmse_ref(r1, r2), rtol=1e-5, atol=1e-5)
    assert jnp.allclose(rmse(r1, r2, rmask), _rmse_ref(r1, r2, rmask),
                        rtol=1e-5, atol=1e-5)

    # Larger feature count: exercises the sublane row-fold (rows = 8) and the
    # automatic 2-way split of a whole-row tile across TensorCores.
    lshape = (2, 4, 64, 128)
    l1 = jax.random.normal(ks[6], lshape, dtype=jnp.float32)
    l2 = jax.random.normal(ks[7], lshape, dtype=jnp.float32)
    lmask = (jax.random.uniform(ks[5], lshape) > 0.5).astype(jnp.float32)
    assert jnp.allclose(rmse(l1, l2), _rmse_ref(l1, l2), rtol=1e-5, atol=1e-5)
    assert jnp.allclose(rmse(l1, l2, lmask), _rmse_ref(l1, l2, lmask),
                        rtol=1e-5, atol=1e-5)

    print("KERNEL_OK")
</pallas_src>

<mosaic_0001>
module attributes {stable_mosaic.version = 11 : i64} {
  func.func @_rmse_sum_kernel(%arg0: i32, %arg1: i32, %arg2: memref<2x512xf32, #tpu.memory_space<vmem>>, %arg3: memref<2x512xf32, #tpu.memory_space<vmem>>, %arg4: memref<1x1x1xf32, #tpu.memory_space<vmem>>, %arg5: memref<2x512xf32, #tpu.memory_space<vmem>>) attributes {dimension_semantics = [#tpu.dimension_semantics<parallel>, #tpu.dimension_semantics<arbitrary>], iteration_bounds = array<i64: 2, 1>, scalar_prefetch = 0 : i64, scratch_operands = 1 : i64, tpu.core_type = #tpu.core_type<tc>, window_params = [{transform_indices = @transform_0, window_bounds = array<i64: 2, 512>}, {transform_indices = @transform_1, window_bounds = array<i64: 2, 512>}, {transform_indices = @transform_2, window_bounds = array<i64: 1, 1, 1>}]} {
    %c0_i32 = arith.constant 0 : i32
    %0 = arith.cmpi eq, %arg1, %c0_i32 : i32
    %1 = arith.extui %0 : i1 to i32
    %c0_i32_0 = arith.constant 0 : i32
    %2 = arith.cmpi ne, %1, %c0_i32_0 : i32
    scf.if %2 {
      %cst = arith.constant 0.000000e+00 : f32
      %13 = vector.broadcast %cst : f32 to vector<2x512xf32>
      %c0_10 = arith.constant 0 : index
      %c0_11 = arith.constant 0 : index
      %14 = vector.load %arg5[%c0_10, %c0_11] : memref<2x512xf32, #tpu.memory_space<vmem>>, vector<2x512xf32>
      tpu.vector_store %arg5[%c0_10, %c0_11], %13 {strides = array<i32>} : memref<2x512xf32, #tpu.memory_space<vmem>>, vector<2x512xf32>,
    } else {
    }
    %c0 = arith.constant 0 : index
    %c0_1 = arith.constant 0 : index
    %3 = vector.load %arg2[%c0, %c0_1] : memref<2x512xf32, #tpu.memory_space<vmem>>, vector<2x512xf32>
    %c0_2 = arith.constant 0 : index
    %c0_3 = arith.constant 0 : index
    %4 = vector.load %arg3[%c0_2, %c0_3] : memref<2x512xf32, #tpu.memory_space<vmem>>, vector<2x512xf32>
    %5 = arith.subf %3, %4 : vector<2x512xf32>
    %6 = arith.mulf %5, %5 : vector<2x512xf32>
    %c0_4 = arith.constant 0 : index
    %c0_5 = arith.constant 0 : index
    %7 = vector.load %arg5[%c0_4, %c0_5] : memref<2x512xf32, #tpu.memory_space<vmem>>, vector<2x512xf32>
    %8 = arith.addf %7, %6 : vector<2x512xf32>
    %c0_6 = arith.constant 0 : index
    %c0_7 = arith.constant 0 : index
    %9 = vector.load %arg5[%c0_6, %c0_7] : memref<2x512xf32, #tpu.memory_space<vmem>>, vector<2x512xf32>
    tpu.vector_store %arg5[%c0_6, %c0_7], %8 {strides = array<i32>} : memref<2x512xf32, #tpu.memory_space<vmem>>, vector<2x512xf32>,
    %c0_i32_8 = arith.constant 0 : i32
    %10 = arith.cmpi eq, %arg1, %c0_i32_8 : i32
    %11 = arith.extui %10 : i1 to i32
    %c0_i32_9 = arith.constant 0 : i32
    %12 = arith.cmpi ne, %11, %c0_i32_9 : i32
    scf.if %12 {
      %c0_10 = arith.constant 0 : index
      %c0_11 = arith.constant 0 : index
      %13 = vector.load %arg5[%c0_10, %c0_11] : memref<2x512xf32, #tpu.memory_space<vmem>>, vector<2x512xf32>
      %14 = vector.shape_cast %13 : vector<2x512xf32> to vector<1x2x512xf32>
      %cst = arith.constant dense<0.000000e+00> : vector<1xf32>
      %15 = vector.multi_reduction <add>, %14, %cst [1, 2] : vector<1x2x512xf32> to vector<1xf32>
      %16 = vector.shape_cast %15 : vector<1xf32> to vector<1x1x1xf32>
      %17 = vector.extract %16[0, 0, 0] : f32 from vector<1x1x1xf32>
      %18 = vector.broadcast %17 : f32 to vector<1x1x1xf32>
      %c0_12 = arith.constant 0 : index
      %c0_13 = arith.constant 0 : index
      %c0_14 = arith.constant 0 : index
      %19 = vector.load %arg4[%c0_12, %c0_13, %c0_14] : memref<1x1x1xf32, #tpu.memory_space<vmem>>, vector<1x1x1xf32>
      tpu.vector_store %arg4[%c0_12, %c0_13, %c0_14], %18 {strides = array<i32>} : memref<1x1x1xf32, #tpu.memory_space<vmem>>, vector<1x1x1xf32>,
    } else {
    }
    return
  }
  func.func @transform_0(%arg0: i32, %arg1: i32) -> (i32, i32) {
    %c1_i32 = arith.constant 1 : i32
    %0 = arith.muli %arg0, %c1_i32 : i32
    %1 = arith.addi %0, %arg1 : i32
    %c0_i32 = arith.constant 0 : i32
    %c0_i32_0 = arith.constant 0 : i32
    return %c0_i32, %1 : i32, i32
  }
  func.func @transform_1(%arg0: i32, %arg1: i32) -> (i32, i32) {
    %c1_i32 = arith.constant 1 : i32
    %0 = arith.muli %arg0, %c1_i32 : i32
    %1 = arith.addi %0, %arg1 : i32
    %c0_i32 = arith.constant 0 : i32
    %c0_i32_0 = arith.constant 0 : i32
    return %c0_i32, %1 : i32, i32
  }
  func.func @transform_2(%arg0: i32, %arg1: i32) -> (i32, i32, i32) {
    %c0_i32 = arith.constant 0 : i32
    %c0_i32_0 = arith.constant 0 : i32
    %c0_i32_1 = arith.constant 0 : i32
    return %arg0, %c0_i32, %c0_i32_0 : i32, i32, i32
  }
}

</mosaic_0001>

<llo_original>
// kernel: tpu_custom_call.1
$region0: #{tpu_custom_call.1}
  #allocation0 [shape = 'u32[]', space=smem, size = 0x4, offset = 0x4, fixed_abs, tag = 'smem constant byte address 0x4 - core index']
  #allocation1 [shape = 'u32[144,128]{1,0:T(1,128)}', space=vmem, size = 0x12000, scoped, tag = 'internal scratch']
  #allocation2 [shape = 'f32[2,512]{1,0:T(2,128)}', space=vmem, size = 0x1000, scoped, tag = 'scratch operand']
  %s0 = inlined_call_operand.hbm [shape: f32[2,1024], index: 0, kind: input, shape index: {}]
  %s1 = inlined_call_operand.hbm [shape: f32[2,1024], index: 1, kind: input, shape index: {}]
  %s2 = inlined_call_operand.vmem [shape: f32[2,1,1], index: 2, kind: output, shape index: {}]
  %s3 = sld [smem:[#allocation0]]
  $region57: #{tpu_custom_call.1} parent=0
    _
  %s5 = ssub.s32 1, %s3
  %s6 = scalar_select 0, %s5, %s3
  $region1: #{tpu_custom_call.1} parent=0
    #allocation3 [shape = 'u8[8192]{0}', space=vmem, size = 0x2000, scoped, tag = 'input window, operand 0']
    #allocation4 [shape = 's32[2]{0}', space=sflag, size = 0x8, scoped, tag = 'scoped memory for tpu_custom_call.1']
    #allocation5 [shape = 'u8[8192]{0}', space=vmem, size = 0x2000, scoped, tag = 'input window, operand 1']
    #allocation6 [shape = 's32[2]{0}', space=sflag, size = 0x8, scoped, tag = 'scoped memory for tpu_custom_call.1']
    %7 = vsyncpa [#allocation4], 0
    %s8 = scalar_lea.sflag [#allocation4], 1
    %9 = vsyncpa %s8, 0
    %10 = vsyncpa [#allocation6], 0
    %s11 = scalar_lea.sflag [#allocation6], 1
    %12 = vsyncpa %s11, 0
    loop: start=0, step=1, limit=4
    $region2: #{tpu_custom_call.1} parent=1 // loop_pre_header
      _
    $region3: #{tpu_custom_call.1} parent=1 // loop_header
      %s14 = sphi 0, %s18
      %p15 = scmp.ge.s32.totalorder %s14, 4
      %s21 = sphi 0, %s33
      %s22 = sphi 0, %s29
      %s23 = sphi 0, %s21
      %s24 = sphi 0, %s22
      %s25 = sphi 0, %s23
      %s26 = sphi 0, %s24
      %s38 = sphi 0, %s40
      %s41 = sphi 0, %s38
      %s42 = sphi 0, %s41
      %s58 = sphi 0, %s42
      %s66 = sphi 0, %s68
      %s69 = sphi 0, %s66
      %s70 = sphi 0, %s69
      %s86 = sphi 0, %s70
      %s92 = sphi 0, %s94
      %s95 = sphi 0, %s92
      %s96 = sphi 0, %s95
      %s112 = sphi 0, %s96
    $region4: #{tpu_custom_call.1} parent=1 // loop_header_branch
      %17 = sbr.rel (%p15) target = $region8
    $region5: #{tpu_custom_call.1} parent=1 // loop_body
      %s19 = ssub.s32 %s14, 1
      %s20 = ssub.s32 %s14, 2
      %s27 = sadd.s32 1, %s22
      %p28 = scmp.ge.s32.totalorder %s27, 1
      %s29 = scalar_select %p28, 0, %s27
      %s30 = sadd.s32 1, %s21
      %s31 = scalar_select %p28, %s30, %s21
      %p32 = scmp.ge.s32.totalorder %s31, 2
      %s33 = scalar_select %p32, 0, %s31
      %s34 = sadd.s32 %s21, %s22
      %s35 = sadd.s32 %s33, %s29
      %s36 = ssub.s32 %s34, %s35
      %p37 = scmp.eq.s32.totalorder %s36, 0
      %s39 = sadd.s32 %s38, 1
      %s40 = scalar_select %p37, %s38, %s39
      %p43 = pneg %p37
      %p44 = scmp.eq.s32.totalorder %s14, 1
      %p45 = por %p43, %p44
      %p46 = scmp.ne.s32.totalorder %s38, %s41
      %p47 = scmp.eq.s32.totalorder %s14, 0
      %p48 = por %p46, %p47
      %p49 = scmp.ne.s32.totalorder %s38, %s41
      %p50 = scmp.eq.s32.totalorder %s19, 1
      %p51 = por %p49, %p50
      %p52 = scmp.ne.s32.totalorder %s41, %s42
      %p53 = scmp.eq.s32.totalorder %s19, 0
      %p54 = por %p52, %p53
      %p55 = scmp.ne.s32.totalorder %s41, %s42
      %p56 = scmp.eq.s32.totalorder %s20, 1
      %p57 = por %p55, %p56
      %p59 = scmp.ne.s32.totalorder %s42, %s58
      %p60 = scmp.eq.s32.totalorder %s20, 0
      %p61 = por %p59, %p60
      %s62 = sadd.s32 %s21, %s22
      %s63 = sadd.s32 %s33, %s29
      %s64 = ssub.s32 %s62, %s63
      %p65 = scmp.eq.s32.totalorder %s64, 0
      %s67 = sadd.s32 %s66, 1
      %s68 = scalar_select %p65, %s66, %s67
      %p71 = pneg %p65
      %p72 = scmp.eq.s32.totalorder %s14, 1
      %p73 = por %p71, %p72
      %p74 = scmp.ne.s32.totalorder %s66, %s69
      %p75 = scmp.eq.s32.totalorder %s14, 0
      %p76 = por %p74, %p75
      %p77 = scmp.ne.s32.totalorder %s66, %s69
      %p78 = scmp.eq.s32.totalorder %s19, 1
      %p79 = por %p77, %p78
      %p80 = scmp.ne.s32.totalorder %s69, %s70
      %p81 = scmp.eq.s32.totalorder %s19, 0
      %p82 = por %p80, %p81
      %p83 = scmp.ne.s32.totalorder %s69, %s70
      %p84 = scmp.eq.s32.totalorder %s20, 1
      %p85 = por %p83, %p84
      %p87 = scmp.ne.s32.totalorder %s70, %s86
      %p88 = scmp.eq.s32.totalorder %s20, 0
      %p89 = por %p87, %p88
      %s90 = ssub.s32 %s21, %s33
      %p91 = scmp.eq.s32.totalorder %s90, 0
      %s93 = sadd.s32 %s92, 1
      %s94 = scalar_select %p91, %s92, %s93
      %p97 = pneg %p91
      %p98 = scmp.eq.s32.totalorder %s14, 1
      %p99 = por %p97, %p98
      %p100 = scmp.ne.s32.totalorder %s92, %s95
      %p101 = scmp.eq.s32.totalorder %s14, 0
      %p102 = por %p100, %p101
      %p103 = scmp.ne.s32.totalorder %s92, %s95
      %p104 = scmp.eq.s32.totalorder %s19, 1
      %p105 = por %p103, %p104
      %p106 = scmp.ne.s32.totalorder %s95, %s96
      %p107 = scmp.eq.s32.totalorder %s19, 0
      %p108 = por %p106, %p107
      %p109 = scmp.ne.s32.totalorder %s95, %s96
      %p110 = scmp.eq.s32.totalorder %s20, 1
      %p111 = por %p109, %p110
      %p113 = scmp.ne.s32.totalorder %s96, %s112
      %p114 = scmp.eq.s32.totalorder %s20, 0
      %p115 = por %p113, %p114
      %p116 = scmp.le.s32.totalorder 1, %s14
      %p117 = scmp.lt.s32.totalorder %s14, 3
      %p118 = pnand %p116, %p117
      %p119 = pneg %p118
      // Predicated region
      $region9: #{tpu_custom_call.1} parent=5 // pred_check
        _
      $region10: #{tpu_custom_call.1} parent=5 // pred_check_branch
        %121 = sbr.rel (%p118) target = $region12
      $region11: #{tpu_custom_call.1} parent=5 // pred_region
        %s122 = ssub.s32 %s14, 1
      $region12: #{tpu_custom_call.1} parent=5 // pred_fallthru
        _
      %p123 = scmp.lt.s32.totalorder %s14, 2
      // Predicated region
      $region13: #{tpu_custom_call.1} parent=5 // pred_check
        %p124 = pneg %p123
      $region14: #{tpu_custom_call.1} parent=5 // pred_check_branch
        %126 = sbr.rel (%p124) target = $region16
      $region15: #{tpu_custom_call.1} parent=5 // pred_region
        // Predicated region
        $region17: #{tpu_custom_call.1} parent=15 // pred_check
          %p127 = pneg %p48
        $region18: #{tpu_custom_call.1} parent=15 // pred_check_branch
          %129 = sbr.rel (%p127) target = $region20
        $region19: #{tpu_custom_call.1} parent=15 // pred_region
          %s130 = sand.u32 %s38, 1
          %s131 = scalar_lea.sflag [#allocation4], %s130
          %s132 = sand.u32 %s38, 1
          %s133 = smul.addr %s132, 8
          %s134 = scalar_lea.vmem [#allocation3], %s133
          %s135 = sadd.s32 %s21, %s22
          %s136 = smul.u32 4, %s135
          %s138 = ssub.s32 128, 128
          %139 = vsyncadd %s131, %s138
          %s140 = smul.addr %s136, 32
          %s141 = scalar_lea.hbm %s0, %s140
          %s143 = sshll.u32 %s134, 4
          %s144 = int_to_ptr.vmem [resolvable:$true] %s143
          %146 = dma.hbm_to_vmem [thread:$0]  %s141, 128, %s144, %s131
        $region20: #{tpu_custom_call.1} parent=15 // pred_fallthru
          _
        // Predicated region
        $region21: #{tpu_custom_call.1} parent=15 // pred_check
          %p147 = pneg %p76
        $region22: #{tpu_custom_call.1} parent=15 // pred_check_branch
          %149 = sbr.rel (%p147) target = $region24
        $region23: #{tpu_custom_call.1} parent=15 // pred_region
          %s150 = sand.u32 %s66, 1
          %s151 = scalar_lea.sflag [#allocation6], %s150
          %s152 = sand.u32 %s66, 1
          %s153 = smul.addr %s152, 8
          %s154 = scalar_lea.vmem [#allocation5], %s153
          %s155 = sadd.s32 %s21, %s22
          %s156 = smul.u32 4, %s155
          %s158 = ssub.s32 128, 128
          %159 = vsyncadd %s151, %s158
          %s160 = smul.addr %s156, 32
          %s161 = scalar_lea.hbm %s1, %s160
          %s163 = sshll.u32 %s154, 4
          %s164 = int_to_ptr.vmem [resolvable:$true] %s163
          %166 = dma.hbm_to_vmem [thread:$0]  %s161, 128, %s164, %s151
        $region24: #{tpu_custom_call.1} parent=15 // pred_fallthru
          _
      $region16: #{tpu_custom_call.1} parent=5 // pred_fallthru
        _
      %p167 = scmp.le.s32.totalorder 1, %s14
      %p168 = scmp.lt.s32.totalorder %s14, 3
      %p169 = pnand %p167, %p168
      %p170 = pneg %p169
      // Predicated region
      $region25: #{tpu_custom_call.1} parent=5 // pred_check
        _
      $region26: #{tpu_custom_call.1} parent=5 // pred_check_branch
        %172 = sbr.rel (%p169) target = $region28
      $region27: #{tpu_custom_call.1} parent=5 // pred_region
        %s173 = ssub.s32 %s14, 1
        %s174 = sand.u32 %s41, 1
        %s175 = scalar_lea.sflag [#allocation4], %s174
        %s176 = sand.u32 %s41, 1
        %s177 = smul.addr %s176, 8
        %s178 = scalar_lea.vmem [#allocation3], %s177
        // Predicated region
        $region29: #{tpu_custom_call.1} parent=27 // pred_check
          %p179 = pneg %p54
        $region30: #{tpu_custom_call.1} parent=27 // pred_check_branch
          %181 = sbr.rel (%p179) target = $region32
        $region31: #{tpu_custom_call.1} parent=27 // pred_region
          %182 = dma.done %s175, 128
        $region32: #{tpu_custom_call.1} parent=27 // pred_fallthru
          _
        %s183 = sand.u32 %s69, 1
        %s184 = scalar_lea.sflag [#allocation6], %s183
        %s185 = sand.u32 %s69, 1
        %s186 = smul.addr %s185, 8
        %s187 = scalar_lea.vmem [#allocation5], %s186
        // Predicated region
        $region33: #{tpu_custom_call.1} parent=27 // pred_check
          %p188 = pneg %p82
        $region34: #{tpu_custom_call.1} parent=27 // pred_check_branch
          %190 = sbr.rel (%p188) target = $region36
        $region35: #{tpu_custom_call.1} parent=27 // pred_region
          %191 = dma.done %s184, 128
        $region36: #{tpu_custom_call.1} parent=27 // pred_fallthru
          _
        %s192 = sand.u32 %s41, 1
        %s193 = scalar_lea.sflag [#allocation4], %s192
        %s194 = sand.u32 %s41, 1
        %s195 = smul.addr %s194, 8
        %s196 = scalar_lea.vmem [#allocation3], %s195
        %p197 = pneg %p54
        %p198 = pneg %p51
        %s199 = sand.u32 %s69, 1
        %s200 = scalar_lea.sflag [#allocation6], %s199
        %s201 = sand.u32 %s69, 1
        %s202 = smul.addr %s201, 8
        %s203 = scalar_lea.vmem [#allocation5], %s202
        %p204 = pneg %p82
        %p205 = pneg %p79
        %p206 = pneg %p108
        %p207 = pneg %p105
        %p208 = scmp.lt.s32.totalorder %s23, 1
        %s209 = scalar_select %p208, %s23, 1
        %s210 = scalar_lea.vmem %s2, %s209
        %s211 = sadd.s32 %s23, %s24
        %s212 = smul.u32 4, %s211
        %s213 = sadd.s32 %s23, %s24
        %s214 = smul.u32 4, %s213
        %p215 = scmp.lt.s32.totalorder %s23, 1
        %s216 = scalar_select %p215, %s23, 1
        %s217 = scalar_lea.vmem %s2, %s216
        %p218 = scmp.eq.s32.totalorder %s24, 0
        // Predicated region
        $region37: #{tpu_custom_call.1} parent=27 // pred_check
          %p219 = pneg %p218
        $region38: #{tpu_custom_call.1} parent=27 // pred_check_branch
          %221 = sbr.rel (%p219) target = $region40
        $region39: #{tpu_custom_call.1} parent=27 // pred_region
          %222 = vst [vmem:[#allocation2] sm:$0xff] 0.0
        $region40: #{tpu_custom_call.1} parent=27 // pred_fallthru
          _
        %v223 = vld [vmem:[%s178] sm:$0xff]
        %v224 = vld [vmem:[%s187] sm:$0xff]
        %v225 = vsub.f32 %v223, %v224
        %v226 = vmul.f32 %v225, %v225
        %v227 = vld [vmem:[#allocation2] sm:$0xff]
        %v228 = vadd.f32 %v227, %v226
        %229 = vst [vmem:[#allocation2] sm:$0xff] %v228
        // Predicated region
        $region41: #{tpu_custom_call.1} parent=27 // pred_check
          %p230 = pneg %p218
        $region42: #{tpu_custom_call.1} parent=27 // pred_check_branch
          %232 = sbr.rel (%p230) target = $region44
        $region43: #{tpu_custom_call.1} parent=27 // pred_region
          %v233 = vld [vmem:[#allocation2] sm:$0xff]
          %v235 = vcombine.high %v233, %v233
          %v237 = vunpack.c.l.s4 1983009808
          %v238 = vunpack.c.0.s8 %v237
          %v239 = vlaneseq
          %v240 = vshrl.u32 %v239, 7
          %v241 = vsub.s32 %v238, %v240
          %v242 = vrot.slane %v233, %v241
          %v244 = vunpack.c.l.s4 1983009808
          %v245 = vunpack.c.0.s8 %v244
          %v246 = vlaneseq
          %v247 = vshrl.u32 %v246, 7
          %v248 = vsub.s32 %v245, %v247
          %v249 = vrot.slane %v235, %v248
          %v250 = vcombine.high %v242, %v242
          %v251 = vcombine.high %v249, %v249
          %vm256 = vcmask 1041408
          %v257 = vsel %vm256, %v242, 0.0
          %v258 = vsel %vm256, %v250, 0.0
          %v259 = vadd.f32 %v257, %v258
          %v260 = vsel %vm256, %v249, 0.0
          %v261 = vadd.f32 %v259, %v260
          %v262 = vsel %vm256, %v251, 0.0
          %v263 = vadd.f32 %v261, %v262
          %264 = vadd.xlane.f32.xlu0 %v263
          %v265 = vpop.xlane.xlu0 %264
          %v266 = vrot.slane %v265, 4
          %v267 = vadd.f32 %v265, %v266
          %v268 = vrot.slane %v267, 2
          %v269 = vadd.f32 %v267, %v268
          %v270 = vrot.slane %v269, 1
          %v271 = vadd.f32 %v269, %v270
          %s272 = vtos %v271
          %v273 = vstv %s272
          %vm274 = vcmask 0
          %275 = vst.msk [vmem:[%s217] sm:$0x1] %vm274, %v273
        $region44: #{tpu_custom_call.1} parent=27 // pred_fallthru
          _
        %p276 = scmp.lt.s32.totalorder %s23, 1
        %s277 = scalar_select %p276, %s23, 1
        %s278 = scalar_lea.vmem %s2, %s277
        // Predicated region
        $region45: #{tpu_custom_call.1} parent=27 // pred_check
          %p279 = pneg %p105
        $region46: #{tpu_custom_call.1} parent=27 // pred_check_branch
          %281 = sbr.rel (%p279) target = $region48
        $region47: #{tpu_custom_call.1} parent=27 // pred_region
          _
        $region48: #{tpu_custom_call.1} parent=27 // pred_fallthru
          _
      $region28: #{tpu_custom_call.1} parent=5 // pred_fallthru
        _
      %p282 = scmp.le.s32.totalorder 2, %s14
      // Predicated region
      $region49: #{tpu_custom_call.1} parent=5 // pred_check
        %p283 = pneg %p282
      $region50: #{tpu_custom_call.1} parent=5 // pred_check_branch
        %285 = sbr.rel (%p283) target = $region52
      $region51: #{tpu_custom_call.1} parent=5 // pred_region
        %s286 = ssub.s32 %s14, 2
        // Predicated region
        $region53: #{tpu_custom_call.1} parent=51 // pred_check
          %p287 = pneg %p111
        $region54: #{tpu_custom_call.1} parent=51 // pred_check_branch
          %289 = sbr.rel (%p287) target = $region56
        $region55: #{tpu_custom_call.1} parent=51 // pred_region
          %p290 = scmp.lt.s32.totalorder %s25, 1
          %s291 = scalar_select %p290, %s25, 1
          %s292 = scalar_lea.vmem %s2, %s291
        $region56: #{tpu_custom_call.1} parent=51 // pred_fallthru
          _
      $region52: #{tpu_custom_call.1} parent=5 // pred_fallthru
        _
    $region6: #{tpu_custom_call.1} parent=1 // loop_footer
      %s18 = sadd.s32 1, %s14
    $region7: #{tpu_custom_call.1} parent=1 // loop_footer_branch
      %13 = sbr.rel target = $region3
    $region8: #{tpu_custom_call.1} parent=1 // loop_exit
      _
    %293 = vsyncpa [#allocation4], 1
    %s294 = scalar_lea.sflag [#allocation4], 1
    %295 = vsyncpa %s294, 1
    %296 = vsyncpa [#allocation6], 1
    %s297 = scalar_lea.sflag [#allocation6], 1
    %298 = vsyncpa %s297, 1

</llo_original>
